<compile_context>
chip_gen: v5e
topology: v5e:2x2
jax: 0.10.0
libtpu: 0.0.40
codegen_flags: <defaults>
</compile_context>

<pallas_src>
import jax
import jax.numpy as jnp
from jax import lax
from jax.experimental import pallas as pl
from jax.experimental.pallas import tpu as pltpu

# ---- small synthetic model dims ---------------------------------------------
VOCAB, TYPE_VOCAB, MAX_POS = 100, 2, 16
B, S, H = 2, 8, 32          # batch, seq, hidden
NH, DH = 2, 16              # heads, head dim
FFN = 64                    # intermediate size
LN_EPS = 1e-12

# combined embedding table (word ++ type ++ pos), padded to a multiple of 8 rows
OFF_TYPE = VOCAB                       # 100
OFF_POS = VOCAB + TYPE_VOCAB           # 102
TBL = 120                              # 118 real rows + 2 zero pad rows

# single packed parameter slab (SLAB_ROWS, 128); all row starts multiple of 8
R_WQKV, R_WO, R_W1, R_WPOOL, R_W2, R_EMB, R_BANK = 0, 32, 64, 96, 128, 192, 312
SLAB_ROWS = 328
OUT_LANES = 128

# rows inside the bias / LN / head bank (16 x 128 block at R_BANK)
R_EMB_G, R_EMB_B = 0, 1
R_BQKV, R_BO = 2, 3
R_LN1G, R_LN1B = 4, 5
R_B1, R_B2 = 6, 7
R_LN2G, R_LN2B = 8, 9
R_BPOOL = 10
R_WFIN, R_BFIN = 11, 12
BANK_ROWS = 16


def _layernorm(x, g, b):
    mu = jnp.mean(x, axis=-1, keepdims=True)
    var = jnp.mean(jnp.square(x - mu), axis=-1, keepdims=True)
    return (x - mu) * lax.rsqrt(var + LN_EPS) * g + b


# ---- single fused kernel: embed -> encoder layer -> pooler -> head -----------
def fused_kernel(x_ref, tt_ref, mask_ref, w_ref, out_ref):
    bank = w_ref[R_BANK:R_BANK + BANK_ROWS, :]

    def row(r, width):
        return bank[r:r + 1, 0:width]                                 # (1, width)

    wqkv = w_ref[R_WQKV:R_WQKV + H, 0:3 * H]                          # (H, 3H)
    wo = w_ref[R_WO:R_WO + H, 0:H]                                    # (H, H)
    w1 = w_ref[R_W1:R_W1 + H, 0:FFN]                                  # (H, FFN)
    wpool = w_ref[R_WPOOL:R_WPOOL + H, 0:H]                           # (H, H)
    w2 = w_ref[R_W2:R_W2 + FFN, 0:H]                                  # (FFN, H)
    tbl = w_ref[R_EMB:R_EMB + TBL, 0:H]                               # (TBL, H)

    # ---- embedding lookups: word + type + pos gathered by ONE one-hot matmul ----
    ids = x_ref[...][:, :, None]                                      # (B, S, 1)
    tids = tt_ref[...][:, :, None] + OFF_TYPE
    pos = lax.broadcasted_iota(jnp.int32, (B, S, 1), 1) + OFF_POS
    vt = lax.broadcasted_iota(jnp.int32, (B, S, TBL), 2)
    onehot = ((vt == ids) | (vt == tids) | (vt == pos)).astype(jnp.float32)
    emb = jnp.dot(onehot.reshape(B * S, TBL), tbl,
                  preferred_element_type=jnp.float32)                 # (B*S, H)
    x = _layernorm(emb, row(R_EMB_G, H), row(R_EMB_B, H))

    # ---- self-attention: one fused QKV matmul for the whole batch ----
    neg = ((1.0 - mask_ref[...]) * -1e9)[:, None, :]                  # (B, 1, S)
    qkv = jnp.dot(x, wqkv, preferred_element_type=jnp.float32) + row(R_BQKV, 3 * H)
    q = qkv[:, 0:H].reshape(B, S, H)
    k = qkv[:, H:2 * H].reshape(B, S, H)
    v = qkv[:, 2 * H:3 * H].reshape(B, S, H)
    scale = 1.0 / (DH ** 0.5)

    ctx_heads = []
    for h in range(NH):                                               # static, NH == 2
        sl = slice(h * DH, (h + 1) * DH)
        att = jnp.einsum('bqd,bkd->bqk', q[:, :, sl], k[:, :, sl],
                         preferred_element_type=jnp.float32) * scale + neg
        m = jnp.max(att, axis=-1, keepdims=True)
        p = jnp.exp(att - m)
        a = p * pl.reciprocal(jnp.sum(p, axis=-1, keepdims=True), approx=True)
        ctx_heads.append(jnp.einsum('bqk,bkd->bqd', a, v[:, :, sl],
                                    preferred_element_type=jnp.float32))
    # heads are lane-adjacent halves of one vreg -> single merged output projection
    ctx = jnp.concatenate(ctx_heads, axis=-1).reshape(B * S, H)       # (B*S, H)
    attn_out = jnp.dot(ctx, wo, preferred_element_type=jnp.float32) + row(R_BO, H)

    h1 = _layernorm(x + attn_out, row(R_LN1G, H), row(R_LN1B, H))

    # ---- FFN ----
    ffn = jnp.dot(h1, w1, preferred_element_type=jnp.float32) + row(R_B1, FFN)
    # TODO(synk): HF BERT uses the exact erf GELU; tanh approximation used here.
    ffn = jax.nn.gelu(ffn, approximate=True)
    ffn = jnp.dot(ffn, w2, preferred_element_type=jnp.float32) + row(R_B2, H)
    h2 = _layernorm(h1 + ffn, row(R_LN2G, H), row(R_LN2B, H))

    # ---- pooler on ALL rows (no sublane concat) + regression head ----
    pooled = jnp.tanh(jnp.dot(h2, wpool, preferred_element_type=jnp.float32)
                      + row(R_BPOOL, H))                              # (B*S, H)
    # nn.Dropout(0.3) -> identity in eval mode
    logit_row = lax.dot_general(row(R_WFIN, H), pooled,
                                dimension_numbers=(((1,), (1,)), ((), ())),
                                preferred_element_type=jnp.float32)   # (1, B*S)
    # lane-side CLS selection + pad to a lane-dense (1, 128) row
    ri = lax.broadcasted_iota(jnp.int32, (B * S, OUT_LANES), 0)
    ci = lax.broadcasted_iota(jnp.int32, (B * S, OUT_LANES), 1)
    selmat = ((ci < B) & (ri == ci * S)).astype(jnp.float32)          # (B*S, 128)
    logit = jnp.dot(logit_row, selmat, preferred_element_type=jnp.float32)
    logit = logit + bank[R_BFIN:R_BFIN + 1, 0:1]
    out_ref[...] = jax.nn.sigmoid(logit)                              # (1, 128) unmasked store


# ---- pallas_call wrapper (single step, no grid, everything resident in VMEM) -
def fused_forward(x_ids, tt_ids, mask, slab):
    vmem = pl.BlockSpec(memory_space=pltpu.MemorySpace.VMEM)
    return pl.pallas_call(
        fused_kernel,
        out_shape=jax.ShapeDtypeStruct((1, OUT_LANES), jnp.float32),
        in_specs=[vmem, vmem, vmem, vmem],
        out_specs=vmem,
    )(x_ids, tt_ids, mask, slab)


# ---- parameters (deterministic, in-script, pre-packed into one slab) ---------
def init_params(key):
    ks = jax.random.split(key, 12)
    w = lambda k, shape, s=0.05: jax.random.normal(k, shape, jnp.float32) * s

    word_emb = w(ks[0], (VOCAB, H))
    type_emb = w(ks[1], (TYPE_VOCAB, H))
    pos_emb = w(ks[2], (MAX_POS, H))
    wq, wk, wv = w(ks[3], (H, H)), w(ks[4], (H, H)), w(ks[5], (H, H))
    wo = w(ks[6], (H, H))
    w1 = w(ks[7], (H, FFN))
    w2 = w(ks[8], (FFN, H))
    w_pool = w(ks[9], (H, H))
    w_final = w(ks[10], (H, 1))

    slab = jnp.zeros((SLAB_ROWS, 128), jnp.float32)
    slab = slab.at[R_WQKV:R_WQKV + H, 0:3 * H].set(jnp.concatenate([wq, wk, wv], axis=1))
    slab = slab.at[R_WO:R_WO + H, 0:H].set(wo)
    slab = slab.at[R_W1:R_W1 + H, 0:FFN].set(w1)
    slab = slab.at[R_WPOOL:R_WPOOL + H, 0:H].set(w_pool)
    slab = slab.at[R_W2:R_W2 + FFN, 0:H].set(w2)
    slab = slab.at[R_EMB:R_EMB + VOCAB, 0:H].set(word_emb)
    slab = slab.at[R_EMB + OFF_TYPE:R_EMB + OFF_TYPE + TYPE_VOCAB, 0:H].set(type_emb)
    slab = slab.at[R_EMB + OFF_POS:R_EMB + OFF_POS + MAX_POS, 0:H].set(pos_emb)

    bank = jnp.zeros((BANK_ROWS, 128), jnp.float32)
    bank = bank.at[R_EMB_G, 0:H].set(1.0)
    bank = bank.at[R_LN1G, 0:H].set(1.0)
    bank = bank.at[R_LN2G, 0:H].set(1.0)
    bank = bank.at[R_WFIN, 0:H].set(w_final[:, 0])
    # all biases zero (matching the synthetic init); LN gammas one
    slab = slab.at[R_BANK:R_BANK + BANK_ROWS, :].set(bank)

    return {"slab": slab}


# ---- full forward (mirrors transformer_reg.forward) --------------------------
@jax.jit
def transformer_reg_forward(params, x, x_mask, token_type_ids):
    y_row = fused_forward(x.astype(jnp.int32),
                          token_type_ids.astype(jnp.int32),
                          x_mask.astype(jnp.float32),
                          params["slab"])                             # (1, 128)
    return y_row[0, :B]                                               # == y_pred.view(B)


if __name__ == "__main__":
    key = jax.random.PRNGKey(0)
    k_param, k_tok = jax.random.split(key)
    params = init_params(k_param)

    x = jax.random.randint(k_tok, (B, S), 0, VOCAB, dtype=jnp.int32)
    x_mask = jnp.ones((B, S), jnp.float32).at[1, S - 2:].set(0.0)   # pad last 2 tokens of row 1
    token_type_ids = jnp.zeros((B, S), jnp.int32)

    y = transformer_reg_forward(params, x, x_mask, token_type_ids)
    y = jax.block_until_ready(y)
    assert y.shape == (B,)
    assert bool(jnp.all(jnp.isfinite(y))) and bool(jnp.all((y > 0.0) & (y < 1.0)))
    print("KERNEL_OK")
</pallas_src>

<mosaic_0001>
module attributes {stable_mosaic.version = 11 : i64} {
  func.func @fused_kernel(%arg0: memref<2x8xi32, #tpu.memory_space<vmem>>, %arg1: memref<2x8xi32, #tpu.memory_space<vmem>>, %arg2: memref<2x8xf32, #tpu.memory_space<vmem>>, %arg3: memref<328x128xf32, #tpu.memory_space<vmem>>, %arg4: memref<1x128xf32, #tpu.memory_space<vmem>>) attributes {dimension_semantics = [], scalar_prefetch = 0 : i64, scratch_operands = 0 : i64, tpu.core_type = #tpu.core_type<tc>} {
    %c312 = arith.constant 312 : index
    %c0 = arith.constant 0 : index
    %0 = vector.load %arg3[%c312, %c0] : memref<328x128xf32, #tpu.memory_space<vmem>>, vector<16x128xf32>
    %c0_0 = arith.constant 0 : index
    %c0_1 = arith.constant 0 : index
    %1 = vector.load %arg3[%c0_0, %c0_1] : memref<328x128xf32, #tpu.memory_space<vmem>>, vector<32x96xf32>
    %c32 = arith.constant 32 : index
    %c0_2 = arith.constant 0 : index
    %2 = vector.load %arg3[%c32, %c0_2] : memref<328x128xf32, #tpu.memory_space<vmem>>, vector<32x32xf32>
    %c64 = arith.constant 64 : index
    %c0_3 = arith.constant 0 : index
    %3 = vector.load %arg3[%c64, %c0_3] : memref<328x128xf32, #tpu.memory_space<vmem>>, vector<32x64xf32>
    %c96 = arith.constant 96 : index
    %c0_4 = arith.constant 0 : index
    %4 = vector.load %arg3[%c96, %c0_4] : memref<328x128xf32, #tpu.memory_space<vmem>>, vector<32x32xf32>
    %c128 = arith.constant 128 : index
    %c0_5 = arith.constant 0 : index
    %5 = vector.load %arg3[%c128, %c0_5] : memref<328x128xf32, #tpu.memory_space<vmem>>, vector<64x32xf32>
    %c192 = arith.constant 192 : index
    %c0_6 = arith.constant 0 : index
    %6 = vector.load %arg3[%c192, %c0_6] : memref<328x128xf32, #tpu.memory_space<vmem>>, vector<120x32xf32>
    %c0_7 = arith.constant 0 : index
    %c0_8 = arith.constant 0 : index
    %7 = vector.load %arg0[%c0_7, %c0_8] : memref<2x8xi32, #tpu.memory_space<vmem>>, vector<2x8xi32>
    %8 = vector.shape_cast %7 : vector<2x8xi32> to vector<2x8x1xi32>
    %c0_9 = arith.constant 0 : index
    %c0_10 = arith.constant 0 : index
    %9 = vector.load %arg1[%c0_9, %c0_10] : memref<2x8xi32, #tpu.memory_space<vmem>>, vector<2x8xi32>
    %10 = vector.shape_cast %9 : vector<2x8xi32> to vector<2x8x1xi32>
    %c100_i32 = arith.constant 100 : i32
    %11 = vector.broadcast %c100_i32 : i32 to vector<2x8x1xi32>
    %12 = arith.addi %10, %11 : vector<2x8x1xi32>
    %13 = tpu.iota {dimensions = array<i32: 1>} : vector<2x8x1xi32>
    %c102_i32 = arith.constant 102 : i32
    %14 = vector.broadcast %c102_i32 : i32 to vector<2x8x1xi32>
    %15 = arith.addi %13, %14 : vector<2x8x1xi32>
    %16 = tpu.iota {dimensions = array<i32: 2>} : vector<2x8x120xi32>
    %17 = vector.broadcast %8 : vector<2x8x1xi32> to vector<2x8x120xi32>
    %18 = arith.cmpi eq, %16, %17 : vector<2x8x120xi32>
    %19 = vector.broadcast %12 : vector<2x8x1xi32> to vector<2x8x120xi32>
    %20 = arith.cmpi eq, %16, %19 : vector<2x8x120xi32>
    %21 = arith.ori %18, %20 : vector<2x8x120xi1>
    %22 = vector.broadcast %15 : vector<2x8x1xi32> to vector<2x8x120xi32>
    %23 = arith.cmpi eq, %16, %22 : vector<2x8x120xi32>
    %24 = arith.ori %21, %23 : vector<2x8x120xi1>
    %25 = arith.extui %24 : vector<2x8x120xi1> to vector<2x8x120xi32>
    %26 = arith.sitofp %25 : vector<2x8x120xi32> to vector<2x8x120xf32>
    %27 = vector.shape_cast %26 : vector<2x8x120xf32> to vector<16x120xf32>
    %cst = arith.constant dense<0.000000e+00> : vector<16x32xf32>
    %28 = tpu.matmul %27, %6, %cst {dimension_numbers = #tpu.dot_dimension_numbers<[1], [0], [0], [1], [0, 0, 1, 1], [], []>} : vector<16x120xf32>, vector<120x32xf32>, vector<16x32xf32> -> vector<16x32xf32>
    %29 = vector.extract_strided_slice %0 {offsets = [0, 0], sizes = [1, 32], strides = [1, 1]} : vector<16x128xf32> to vector<1x32xf32>
    %30 = vector.extract_strided_slice %0 {offsets = [1, 0], sizes = [1, 32], strides = [1, 1]} : vector<16x128xf32> to vector<1x32xf32>
    %cst_11 = arith.constant dense<0.000000e+00> : vector<16xf32>
    %31 = vector.multi_reduction <add>, %28, %cst_11 [1] : vector<16x32xf32> to vector<16xf32>
    %32 = vector.shape_cast %31 : vector<16xf32> to vector<16x1xf32>
    %cst_12 = arith.constant 3.200000e+01 : f32
    %33 = vector.broadcast %cst_12 : f32 to vector<16x1xf32>
    %34 = arith.divf %32, %33 : vector<16x1xf32>
    %35 = vector.broadcast %34 : vector<16x1xf32> to vector<16x32xf32>
    %36 = arith.subf %28, %35 : vector<16x32xf32>
    %37 = arith.mulf %36, %36 : vector<16x32xf32>
    %cst_13 = arith.constant dense<0.000000e+00> : vector<16xf32>
    %38 = vector.multi_reduction <add>, %37, %cst_13 [1] : vector<16x32xf32> to vector<16xf32>
    %39 = vector.shape_cast %38 : vector<16xf32> to vector<16x1xf32>
    %cst_14 = arith.constant 3.200000e+01 : f32
    %40 = vector.broadcast %cst_14 : f32 to vector<16x1xf32>
    %41 = arith.divf %39, %40 : vector<16x1xf32>
    %42 = vector.broadcast %34 : vector<16x1xf32> to vector<16x32xf32>
    %43 = arith.subf %28, %42 : vector<16x32xf32>
    %cst_15 = arith.constant 9.99999996E-13 : f32
    %44 = vector.broadcast %cst_15 : f32 to vector<16x1xf32>
    %45 = arith.addf %41, %44 : vector<16x1xf32>
    %46 = math.rsqrt %45 : vector<16x1xf32>
    %47 = vector.broadcast %46 : vector<16x1xf32> to vector<16x32xf32>
    %48 = arith.mulf %43, %47 : vector<16x32xf32>
    %49 = vector.broadcast %29 : vector<1x32xf32> to vector<16x32xf32>
    %50 = arith.mulf %48, %49 : vector<16x32xf32>
    %51 = vector.broadcast %30 : vector<1x32xf32> to vector<16x32xf32>
    %52 = arith.addf %50, %51 : vector<16x32xf32>
    %c0_16 = arith.constant 0 : index
    %c0_17 = arith.constant 0 : index
    %53 = vector.load %arg2[%c0_16, %c0_17] : memref<2x8xf32, #tpu.memory_space<vmem>>, vector<2x8xf32>
    %cst_18 = arith.constant 1.000000e+00 : f32
    %54 = vector.broadcast %cst_18 : f32 to vector<2x8xf32>
    %55 = arith.subf %54, %53 : vector<2x8xf32>
    %cst_19 = arith.constant -1.000000e+09 : f32
    %56 = vector.broadcast %cst_19 : f32 to vector<2x8xf32>
    %57 = arith.mulf %55, %56 : vector<2x8xf32>
    %58 = vector.shape_cast %57 : vector<2x8xf32> to vector<2x1x8xf32>
    %cst_20 = arith.constant dense<0.000000e+00> : vector<16x96xf32>
    %59 = tpu.matmul %52, %1, %cst_20 {dimension_numbers = #tpu.dot_dimension_numbers<[1], [0], [0], [1], [0, 0, 1, 1], [], []>} : vector<16x32xf32>, vector<32x96xf32>, vector<16x96xf32> -> vector<16x96xf32>
    %60 = vector.extract_strided_slice %0 {offsets = [2, 0], sizes = [1, 96], strides = [1, 1]} : vector<16x128xf32> to vector<1x96xf32>
    %61 = vector.broadcast %60 : vector<1x96xf32> to vector<16x96xf32>
    %62 = arith.addf %59, %61 : vector<16x96xf32>
    %63 = vector.extract_strided_slice %62 {offsets = [0, 0], sizes = [16, 32], strides = [1, 1]} : vector<16x96xf32> to vector<16x32xf32>
    %64 = vector.shape_cast %63 : vector<16x32xf32> to vector<2x8x32xf32>
    %65 = vector.extract_strided_slice %62 {offsets = [0, 32], sizes = [16, 32], strides = [1, 1]} : vector<16x96xf32> to vector<16x32xf32>
    %66 = vector.shape_cast %65 : vector<16x32xf32> to vector<2x8x32xf32>
    %67 = vector.extract_strided_slice %62 {offsets = [0, 64], sizes = [16, 32], strides = [1, 1]} : vector<16x96xf32> to vector<16x32xf32>
    %68 = vector.shape_cast %67 : vector<16x32xf32> to vector<2x8x32xf32>
    %69 = vector.extract_strided_slice %64 {offsets = [0, 0, 0], sizes = [2, 8, 16], strides = [1, 1, 1]} : vector<2x8x32xf32> to vector<2x8x16xf32>
    %70 = vector.extract_strided_slice %66 {offsets = [0, 0, 0], sizes = [2, 8, 16], strides = [1, 1, 1]} : vector<2x8x32xf32> to vector<2x8x16xf32>
    "tpu.trace_start"() <{level = 10 : i32, message = "bqd,bkd->bqk"}> : () -> ()
    %cst_21 = arith.constant dense<0.000000e+00> : vector<2x8x8xf32>
    %71 = tpu.matmul %69, %70, %cst_21 {dimension_numbers = #tpu.dot_dimension_numbers<[2], [2], [1], [1], [0, 0, 0, 1, 1, 1], [0], [0]>} : vector<2x8x16xf32>, vector<2x8x16xf32>, vector<2x8x8xf32> -> vector<2x8x8xf32>
    "tpu.trace_stop"() : () -> ()
    %cst_22 = arith.constant 2.500000e-01 : f32
    %72 = vector.broadcast %cst_22 : f32 to vector<2x8x8xf32>
    %73 = arith.mulf %71, %72 : vector<2x8x8xf32>
    %74 = vector.broadcast %58 : vector<2x1x8xf32> to vector<2x8x8xf32>
    %75 = arith.addf %73, %74 : vector<2x8x8xf32>
    %cst_23 = arith.constant dense<0xFF800000> : vector<2x8xf32>
    %76 = vector.multi_reduction <maximumf>, %75, %cst_23 [2] : vector<2x8x8xf32> to vector<2x8xf32>
    %77 = vector.shape_cast %76 : vector<2x8xf32> to vector<2x8x1xf32>
    %78 = vector.broadcast %77 : vector<2x8x1xf32> to vector<2x8x8xf32>
    %79 = arith.subf %75, %78 : vector<2x8x8xf32>
    %80 = math.exp %79 : vector<2x8x8xf32>
    %cst_24 = arith.constant dense<0.000000e+00> : vector<2x8xf32>
    %81 = vector.multi_reduction <add>, %80, %cst_24 [2] : vector<2x8x8xf32> to vector<2x8xf32>
    %82 = vector.shape_cast %81 : vector<2x8xf32> to vector<2x8x1xf32>
    %83 = tpu.reciprocal %82 {approx = true} : vector<2x8x1xf32> -> vector<2x8x1xf32>
    %84 = vector.broadcast %83 : vector<2x8x1xf32> to vector<2x8x8xf32>
    %85 = arith.mulf %80, %84 : vector<2x8x8xf32>
    %86 = vector.extract_strided_slice %68 {offsets = [0, 0, 0], sizes = [2, 8, 16], strides = [1, 1, 1]} : vector<2x8x32xf32> to vector<2x8x16xf32>
    "tpu.trace_start"() <{level = 10 : i32, message = "bqk,bkd->bqd"}> : () -> ()
    %cst_25 = arith.constant dense<0.000000e+00> : vector<2x8x16xf32>
    %87 = tpu.matmul %85, %86, %cst_25 {dimension_numbers = #tpu.dot_dimension_numbers<[2], [1], [1], [2], [0, 0, 0, 1, 1, 2], [0], [0]>} : vector<2x8x8xf32>, vector<2x8x16xf32>, vector<2x8x16xf32> -> vector<2x8x16xf32>
    "tpu.trace_stop"() : () -> ()
    %88 = vector.extract_strided_slice %64 {offsets = [0, 0, 16], sizes = [2, 8, 16], strides = [1, 1, 1]} : vector<2x8x32xf32> to vector<2x8x16xf32>
    %89 = vector.extract_strided_slice %66 {offsets = [0, 0, 16], sizes = [2, 8, 16], strides = [1, 1, 1]} : vector<2x8x32xf32> to vector<2x8x16xf32>
    "tpu.trace_start"() <{level = 10 : i32, message = "bqd,bkd->bqk"}> : () -> ()
    %cst_26 = arith.constant dense<0.000000e+00> : vector<2x8x8xf32>
    %90 = tpu.matmul %88, %89, %cst_26 {dimension_numbers = #tpu.dot_dimension_numbers<[2], [2], [1], [1], [0, 0, 0, 1, 1, 1], [0], [0]>} : vector<2x8x16xf32>, vector<2x8x16xf32>, vector<2x8x8xf32> -> vector<2x8x8xf32>
    "tpu.trace_stop"() : () -> ()
    %cst_27 = arith.constant 2.500000e-01 : f32
    %91 = vector.broadcast %cst_27 : f32 to vector<2x8x8xf32>
    %92 = arith.mulf %90, %91 : vector<2x8x8xf32>
    %93 = vector.broadcast %58 : vector<2x1x8xf32> to vector<2x8x8xf32>
    %94 = arith.addf %92, %93 : vector<2x8x8xf32>
    %cst_28 = arith.constant dense<0xFF800000> : vector<2x8xf32>
    %95 = vector.multi_reduction <maximumf>, %94, %cst_28 [2] : vector<2x8x8xf32> to vector<2x8xf32>
    %96 = vector.shape_cast %95 : vector<2x8xf32> to vector<2x8x1xf32>
    %97 = vector.broadcast %96 : vector<2x8x1xf32> to vector<2x8x8xf32>
    %98 = arith.subf %94, %97 : vector<2x8x8xf32>
    %99 = math.exp %98 : vector<2x8x8xf32>
    %cst_29 = arith.constant dense<0.000000e+00> : vector<2x8xf32>
    %100 = vector.multi_reduction <add>, %99, %cst_29 [2] : vector<2x8x8xf32> to vector<2x8xf32>
    %101 = vector.shape_cast %100 : vector<2x8xf32> to vector<2x8x1xf32>
    %102 = tpu.reciprocal %101 {approx = true} : vector<2x8x1xf32> -> vector<2x8x1xf32>
    %103 = vector.broadcast %102 : vector<2x8x1xf32> to vector<2x8x8xf32>
    %104 = arith.mulf %99, %103 : vector<2x8x8xf32>
    %105 = vector.extract_strided_slice %68 {offsets = [0, 0, 16], sizes = [2, 8, 16], strides = [1, 1, 1]} : vector<2x8x32xf32> to vector<2x8x16xf32>
    "tpu.trace_start"() <{level = 10 : i32, message = "bqk,bkd->bqd"}> : () -> ()
    %cst_30 = arith.constant dense<0.000000e+00> : vector<2x8x16xf32>
    %106 = tpu.matmul %104, %105, %cst_30 {dimension_numbers = #tpu.dot_dimension_numbers<[2], [1], [1], [2], [0, 0, 0, 1, 1, 2], [0], [0]>} : vector<2x8x8xf32>, vector<2x8x16xf32>, vector<2x8x16xf32> -> vector<2x8x16xf32>
    "tpu.trace_stop"() : () -> ()
    %107 = tpu.concatenate %87, %106 in 2 : vector<2x8x16xf32>, vector<2x8x16xf32> -> vector<2x8x32xf32>
    %108 = vector.shape_cast %107 : vector<2x8x32xf32> to vector<16x32xf32>
    %cst_31 = arith.constant dense<0.000000e+00> : vector<16x32xf32>
    %109 = tpu.matmul %108, %2, %cst_31 {dimension_numbers = #tpu.dot_dimension_numbers<[1], [0], [0], [1], [0, 0, 1, 1], [], []>} : vector<16x32xf32>, vector<32x32xf32>, vector<16x32xf32> -> vector<16x32xf32>
    %110 = vector.extract_strided_slice %0 {offsets = [3, 0], sizes = [1, 32], strides = [1, 1]} : vector<16x128xf32> to vector<1x32xf32>
    %111 = vector.broadcast %110 : vector<1x32xf32> to vector<16x32xf32>
    %112 = arith.addf %109, %111 : vector<16x32xf32>
    %113 = arith.addf %52, %112 : vector<16x32xf32>
    %114 = vector.extract_strided_slice %0 {offsets = [4, 0], sizes = [1, 32], strides = [1, 1]} : vector<16x128xf32> to vector<1x32xf32>
    %115 = vector.extract_strided_slice %0 {offsets = [5, 0], sizes = [1, 32], strides = [1, 1]} : vector<16x128xf32> to vector<1x32xf32>
    %cst_32 = arith.constant dense<0.000000e+00> : vector<16xf32>
    %116 = vector.multi_reduction <add>, %113, %cst_32 [1] : vector<16x32xf32> to vector<16xf32>
    %117 = vector.shape_cast %116 : vector<16xf32> to vector<16x1xf32>
    %cst_33 = arith.constant 3.200000e+01 : f32
    %118 = vector.broadcast %cst_33 : f32 to vector<16x1xf32>
    %119 = arith.divf %117, %118 : vector<16x1xf32>
    %120 = vector.broadcast %119 : vector<16x1xf32> to vector<16x32xf32>
    %121 = arith.subf %113, %120 : vector<16x32xf32>
    %122 = arith.mulf %121, %121 : vector<16x32xf32>
    %cst_34 = arith.constant dense<0.000000e+00> : vector<16xf32>
    %123 = vector.multi_reduction <add>, %122, %cst_34 [1] : vector<16x32xf32> to vector<16xf32>
    %124 = vector.shape_cast %123 : vector<16xf32> to vector<16x1xf32>
    %cst_35 = arith.constant 3.200000e+01 : f32
    %125 = vector.broadcast %cst_35 : f32 to vector<16x1xf32>
    %126 = arith.divf %124, %125 : vector<16x1xf32>
    %127 = vector.broadcast %119 : vector<16x1xf32> to vector<16x32xf32>
    %128 = arith.subf %113, %127 : vector<16x32xf32>
    %cst_36 = arith.constant 9.99999996E-13 : f32
    %129 = vector.broadcast %cst_36 : f32 to vector<16x1xf32>
    %130 = arith.addf %126, %129 : vector<16x1xf32>
    %131 = math.rsqrt %130 : vector<16x1xf32>
    %132 = vector.broadcast %131 : vector<16x1xf32> to vector<16x32xf32>
    %133 = arith.mulf %128, %132 : vector<16x32xf32>
    %134 = vector.broadcast %114 : vector<1x32xf32> to vector<16x32xf32>
    %135 = arith.mulf %133, %134 : vector<16x32xf32>
    %136 = vector.broadcast %115 : vector<1x32xf32> to vector<16x32xf32>
    %137 = arith.addf %135, %136 : vector<16x32xf32>
    %cst_37 = arith.constant dense<0.000000e+00> : vector<16x64xf32>
    %138 = tpu.matmul %137, %3, %cst_37 {dimension_numbers = #tpu.dot_dimension_numbers<[1], [0], [0], [1], [0, 0, 1, 1], [], []>} : vector<16x32xf32>, vector<32x64xf32>, vector<16x64xf32> -> vector<16x64xf32>
    %139 = vector.extract_strided_slice %0 {offsets = [6, 0], sizes = [1, 64], strides = [1, 1]} : vector<16x128xf32> to vector<1x64xf32>
    %140 = vector.broadcast %139 : vector<1x64xf32> to vector<16x64xf32>
    %141 = arith.addf %138, %140 : vector<16x64xf32>
    %142 = arith.mulf %141, %141 : vector<16x64xf32>
    %143 = arith.mulf %141, %142 : vector<16x64xf32>
    %cst_38 = arith.constant 4.471500e-02 : f32
    %144 = vector.broadcast %cst_38 : f32 to vector<16x64xf32>
    %145 = arith.mulf %144, %143 : vector<16x64xf32>
    %146 = arith.addf %141, %145 : vector<16x64xf32>
    %cst_39 = arith.constant 0.797884583 : f32
    %147 = vector.broadcast %cst_39 : f32 to vector<16x64xf32>
    %148 = arith.mulf %147, %146 : vector<16x64xf32>
    %149 = math.tanh %148 : vector<16x64xf32>
    %cst_40 = arith.constant 1.000000e+00 : f32
    %150 = vector.broadcast %cst_40 : f32 to vector<16x64xf32>
    %151 = arith.addf %150, %149 : vector<16x64xf32>
    %cst_41 = arith.constant 5.000000e-01 : f32
    %152 = vector.broadcast %cst_41 : f32 to vector<16x64xf32>
    %153 = arith.mulf %152, %151 : vector<16x64xf32>
    %154 = arith.mulf %141, %153 : vector<16x64xf32>
    %cst_42 = arith.constant dense<0.000000e+00> : vector<16x32xf32>
    %155 = tpu.matmul %154, %5, %cst_42 {dimension_numbers = #tpu.dot_dimension_numbers<[1], [0], [0], [1], [0, 0, 1, 1], [], []>} : vector<16x64xf32>, vector<64x32xf32>, vector<16x32xf32> -> vector<16x32xf32>
    %156 = vector.extract_strided_slice %0 {offsets = [7, 0], sizes = [1, 32], strides = [1, 1]} : vector<16x128xf32> to vector<1x32xf32>
    %157 = vector.broadcast %156 : vector<1x32xf32> to vector<16x32xf32>
    %158 = arith.addf %155, %157 : vector<16x32xf32>
    %159 = arith.addf %137, %158 : vector<16x32xf32>
    %160 = vector.extract_strided_slice %0 {offsets = [8, 0], sizes = [1, 32], strides = [1, 1]} : vector<16x128xf32> to vector<1x32xf32>
    %161 = vector.extract_strided_slice %0 {offsets = [9, 0], sizes = [1, 32], strides = [1, 1]} : vector<16x128xf32> to vector<1x32xf32>
    %cst_43 = arith.constant dense<0.000000e+00> : vector<16xf32>
    %162 = vector.multi_reduction <add>, %159, %cst_43 [1] : vector<16x32xf32> to vector<16xf32>
    %163 = vector.shape_cast %162 : vector<16xf32> to vector<16x1xf32>
    %cst_44 = arith.constant 3.200000e+01 : f32
    %164 = vector.broadcast %cst_44 : f32 to vector<16x1xf32>
    %165 = arith.divf %163, %164 : vector<16x1xf32>
    %166 = vector.broadcast %165 : vector<16x1xf32> to vector<16x32xf32>
    %167 = arith.subf %159, %166 : vector<16x32xf32>
    %168 = arith.mulf %167, %167 : vector<16x32xf32>
    %cst_45 = arith.constant dense<0.000000e+00> : vector<16xf32>
    %169 = vector.multi_reduction <add>, %168, %cst_45 [1] : vector<16x32xf32> to vector<16xf32>
    %170 = vector.shape_cast %169 : vector<16xf32> to vector<16x1xf32>
    %cst_46 = arith.constant 3.200000e+01 : f32
    %171 = vector.broadcast %cst_46 : f32 to vector<16x1xf32>
    %172 = arith.divf %170, %171 : vector<16x1xf32>
    %173 = vector.broadcast %165 : vector<16x1xf32> to vector<16x32xf32>
    %174 = arith.subf %159, %173 : vector<16x32xf32>
    %cst_47 = arith.constant 9.99999996E-13 : f32
    %175 = vector.broadcast %cst_47 : f32 to vector<16x1xf32>
    %176 = arith.addf %172, %175 : vector<16x1xf32>
    %177 = math.rsqrt %176 : vector<16x1xf32>
    %178 = vector.broadcast %177 : vector<16x1xf32> to vector<16x32xf32>
    %179 = arith.mulf %174, %178 : vector<16x32xf32>
    %180 = vector.broadcast %160 : vector<1x32xf32> to vector<16x32xf32>
    %181 = arith.mulf %179, %180 : vector<16x32xf32>
    %182 = vector.broadcast %161 : vector<1x32xf32> to vector<16x32xf32>
    %183 = arith.addf %181, %182 : vector<16x32xf32>
    %cst_48 = arith.constant dense<0.000000e+00> : vector<16x32xf32>
    %184 = tpu.matmul %183, %4, %cst_48 {dimension_numbers = #tpu.dot_dimension_numbers<[1], [0], [0], [1], [0, 0, 1, 1], [], []>} : vector<16x32xf32>, vector<32x32xf32>, vector<16x32xf32> -> vector<16x32xf32>
    %185 = vector.extract_strided_slice %0 {offsets = [10, 0], sizes = [1, 32], strides = [1, 1]} : vector<16x128xf32> to vector<1x32xf32>
    %186 = vector.broadcast %185 : vector<1x32xf32> to vector<16x32xf32>
    %187 = arith.addf %184, %186 : vector<16x32xf32>
    %188 = math.tanh %187 : vector<16x32xf32>
    %189 = vector.extract_strided_slice %0 {offsets = [11, 0], sizes = [1, 32], strides = [1, 1]} : vector<16x128xf32> to vector<1x32xf32>
    %cst_49 = arith.constant dense<0.000000e+00> : vector<1x16xf32>
    %190 = tpu.matmul %189, %188, %cst_49 {dimension_numbers = #tpu.dot_dimension_numbers<[1], [1], [0], [0], [0, 0, 1, 0], [], []>} : vector<1x32xf32>, vector<16x32xf32>, vector<1x16xf32> -> vector<1x16xf32>
    %191 = tpu.iota {dimensions = array<i32: 0>} : vector<16x128xi32>
    %192 = tpu.iota {dimensions = array<i32: 1>} : vector<16x128xi32>
    %c2_i32 = arith.constant 2 : i32
    %193 = vector.broadcast %c2_i32 : i32 to vector<16x128xi32>
    %194 = arith.cmpi slt, %192, %193 : vector<16x128xi32>
    %c8_i32 = arith.constant 8 : i32
    %195 = vector.broadcast %c8_i32 : i32 to vector<16x128xi32>
    %196 = arith.muli %192, %195 : vector<16x128xi32>
    %197 = arith.cmpi eq, %191, %196 : vector<16x128xi32>
    %198 = arith.andi %194, %197 : vector<16x128xi1>
    %199 = arith.extui %198 : vector<16x128xi1> to vector<16x128xi32>
    %200 = arith.sitofp %199 : vector<16x128xi32> to vector<16x128xf32>
    %cst_50 = arith.constant dense<0.000000e+00> : vector<1x128xf32>
    %201 = tpu.matmul %190, %200, %cst_50 {dimension_numbers = #tpu.dot_dimension_numbers<[1], [0], [0], [1], [0, 0, 1, 1], [], []>} : vector<1x16xf32>, vector<16x128xf32>, vector<1x128xf32> -> vector<1x128xf32>
    %202 = vector.extract_strided_slice %0 {offsets = [12, 0], sizes = [1, 1], strides = [1, 1]} : vector<16x128xf32> to vector<1x1xf32>
    %203 = vector.broadcast %202 : vector<1x1xf32> to vector<1x128xf32>
    %204 = arith.addf %201, %203 : vector<1x128xf32>
    %205 = arith.negf %204 : vector<1x128xf32>
    %206 = math.exp %205 : vector<1x128xf32>
    %cst_51 = arith.constant 1.000000e+00 : f32
    %207 = vector.broadcast %cst_51 : f32 to vector<1x128xf32>
    %208 = arith.addf %207, %206 : vector<1x128xf32>
    %209 = arith.divf %207, %208 : vector<1x128xf32>
    %c0_52 = arith.constant 0 : index
    %c0_53 = arith.constant 0 : index
    %210 = vector.load %arg4[%c0_52, %c0_53] : memref<1x128xf32, #tpu.memory_space<vmem>>, vector<1x128xf32>
    tpu.vector_store %arg4[%c0_52, %c0_53], %209 {strides = array<i32>} : memref<1x128xf32, #tpu.memory_space<vmem>>, vector<1x128xf32>,
    return
  }
}

</mosaic_0001>

<llo_original>
// kernel: transformer_reg_forward.1
$region0: #{transformer_reg_forward.1}
  #allocation0 [shape = 'u32[]', space=smem, size = 0x4, offset = 0x4, fixed_abs, tag = 'smem constant byte address 0x4 - core index']
  #allocation1 [shape = 'u32[72,128]{1,0:T(1,128)}', space=vmem, size = 0x9000, scoped, tag = 'internal scratch']
  %s0 = inlined_call_operand.hbm [shape: s32[2,8], index: 0, kind: input, shape index: {}]
  %s1 = inlined_call_operand.vmem [shape: s32[2,8], index: 1, kind: input, shape index: {}]
  %s2 = inlined_call_operand.hbm [shape: f32[2,8], index: 2, kind: input, shape index: {}]
  %s3 = inlined_call_operand.hbm [shape: f32[328,128], index: 3, kind: input, shape index: {}]
  %s4 = inlined_call_operand.vmem [shape: f32[1,128], index: 4, kind: output, shape index: {}]
  %s5 = sld [smem:[#allocation0]]
  $region38: #{transformer_reg_forward.1} parent=0
    _
  %s7 = ssub.s32 1, %s5
  %s8 = scalar_select 0, %s7, %s5
  $region1: #{transformer_reg_forward.1} parent=0
    #allocation2 [shape = 'u8[1024]{0}', space=vmem, size = 0x400, scoped, tag = 'input window, operand 0, single buffered']
    #allocation3 [shape = 's32[1]{0}', space=sflag, size = 0x4, scoped, tag = 'scoped memory for transformer_reg_forward.1']
    #allocation4 [shape = 'u8[1024]{0}', space=vmem, size = 0x400, scoped, tag = 'input window, operand 2, single buffered']
    #allocation5 [shape = 's32[1]{0}', space=sflag, size = 0x4, scoped, tag = 'scoped memory for transformer_reg_forward.1']
    #allocation6 [shape = 'u8[167936]{0}', space=vmem, size = 0x29000, scoped, tag = 'input window, operand 3, single buffered']
    %9 = vsyncpa [#allocation3], 0
    %10 = vsyncpa [#allocation5], 0
    // Predicated region
    $region2: #{transformer_reg_forward.1} parent=1 // pred_check
      _
    $region3: #{transformer_reg_forward.1} parent=1 // pred_check_branch
      %12 = sbr.rel (0) target = $region5
    $region4: #{transformer_reg_forward.1} parent=1 // pred_region
      %14 = vsyncadd [#allocation3], 0
      %s16 = sshll.u32 %s0, 4
      %s17 = int_to_ptr.hbm [resolvable:$true] %s16
      %s18 = sshll.u32 [#allocation2], 4
      %s19 = int_to_ptr.vmem [resolvable:$true] %s18
      %21 = dma.hbm_to_vmem [thread:$0]  %s17, 32, %s19, [#allocation3]
    $region5: #{transformer_reg_forward.1} parent=1 // pred_fallthru
      _
    // Predicated region
    $region6: #{transformer_reg_forward.1} parent=1 // pred_check
      _
    $region7: #{transformer_reg_forward.1} parent=1 // pred_check_branch
      %23 = sbr.rel (0) target = $region9
    $region8: #{transformer_reg_forward.1} parent=1 // pred_region
      _
    $region9: #{transformer_reg_forward.1} parent=1 // pred_fallthru
      _
    // Predicated region
    $region10: #{transformer_reg_forward.1} parent=1 // pred_check
      _
    $region11: #{transformer_reg_forward.1} parent=1 // pred_check_branch
      %25 = sbr.rel (0) target = $region13
    $region12: #{transformer_reg_forward.1} parent=1 // pred_region
      %27 = vsyncadd [#allocation5], 0
      %s29 = sshll.u32 %s2, 4
      %s30 = int_to_ptr.hbm [resolvable:$true] %s29
      %s31 = sshll.u32 [#allocation4], 4
      %s32 = int_to_ptr.vmem [resolvable:$true] %s31
      %34 = dma.hbm_to_vmem [thread:$0]  %s30, 32, %s32, [#allocation5]
    $region13: #{transformer_reg_forward.1} parent=1 // pred_fallthru
      _
    // Predicated region
    $region14: #{transformer_reg_forward.1} parent=1 // pred_check
      _
    $region15: #{transformer_reg_forward.1} parent=1 // pred_check_branch
      %36 = sbr.rel (0) target = $region17
    $region16: #{transformer_reg_forward.1} parent=1 // pred_region
      %38 = vsyncadd [#allocation5], 0
      %s39 = sshll.u32 %s3, 4
      %s40 = int_to_ptr.hbm [resolvable:$true] %s39
      %s41 = sshll.u32 [#allocation6], 4
      %s42 = int_to_ptr.vmem [resolvable:$true] %s41
      %47 = dma.hbm_to_vmem [thread:$0]  %s40, 5248, %s42, [#allocation5], 128, 128, 8
    $region17: #{transformer_reg_forward.1} parent=1 // pred_fallthru
      _
    // Predicated region
    $region18: #{transformer_reg_forward.1} parent=1 // pred_check
      _
    $region19: #{transformer_reg_forward.1} parent=1 // pred_check_branch
      %49 = sbr.rel (0) target = $region21
    $region20: #{transformer_reg_forward.1} parent=1 // pred_region
      %51 = dma.done [#allocation3], 32
    $region21: #{transformer_reg_forward.1} parent=1 // pred_fallthru
      _
    // Predicated region
    $region22: #{transformer_reg_forward.1} parent=1 // pred_check
      _
    $region23: #{transformer_reg_forward.1} parent=1 // pred_check_branch
      %53 = sbr.rel (0) target = $region25
    $region24: #{transformer_reg_forward.1} parent=1 // pred_region
      %55 = dma.done [#allocation5], 32
    $region25: #{transformer_reg_forward.1} parent=1 // pred_fallthru
      _
    // Predicated region
    $region26: #{transformer_reg_forward.1} parent=1 // pred_check
      _
    $region27: #{transformer_reg_forward.1} parent=1 // pred_check_branch
      %57 = sbr.rel (0) target = $region29
    $region28: #{transformer_reg_forward.1} parent=1 // pred_region
      %59 = dma.done [#allocation5], 5248
    $region29: #{transformer_reg_forward.1} parent=1 // pred_fallthru
      _
    %v60 = vld [vmem:[#allocation6 + $0x138] sm:$0xff]
    %v61 = vld [vmem:[#allocation6 + $0x140] sm:$0xff]
    %v62 = vld [vmem:[#allocation6] sm:$0xff]
    %v63 = vld [vmem:[#allocation6 + $0x8] sm:$0xff]
    %v64 = vld [vmem:[#allocation6 + $0x10] sm:$0xff]
    %v65 = vld [vmem:[#allocation6 + $0x18] sm:$0xff]
    %v66 = vld [vmem:[#allocation6 + $0x20] sm:$0xff]
    %v67 = vld [vmem:[#allocation6 + $0x28] sm:$0xff]
    %v68 = vld [vmem:[#allocation6 + $0x30] sm:$0xff]
    %v69 = vld [vmem:[#allocation6 + $0x38] sm:$0xff]
    %v70 = vld [vmem:[#allocation6 + $0x40] sm:$0xff]
    %v71 = vld [vmem:[#allocation6 + $0x48] sm:$0xff]
    %v72 = vld [vmem:[#allocation6 + $0x50] sm:$0xff]
    %v73 = vld [vmem:[#allocation6 + $0x58] sm:$0xff]
    %v74 = vld [vmem:[#allocation6 + $0x60] sm:$0xff]
    %v75 = vld [vmem:[#allocation6 + $0x68] sm:$0xff]
    %v76 = vld [vmem:[#allocation6 + $0x70] sm:$0xff]
    %v77 = vld [vmem:[#allocation6 + $0x78] sm:$0xff]
    %v78 = vld [vmem:[#allocation6 + $0x80] sm:$0xff]
    %v79 = vld [vmem:[#allocation6 + $0x88] sm:$0xff]
    %v80 = vld [vmem:[#allocation6 + $0x90] sm:$0xff]
    %v81 = vld [vmem:[#allocation6 + $0x98] sm:$0xff]
    %v82 = vld [vmem:[#allocation6 + $0xa0] sm:$0xff]
    %v83 = vld [vmem:[#allocation6 + $0xa8] sm:$0xff]
    %v84 = vld [vmem:[#allocation6 + $0xb0] sm:$0xff]
    %v85 = vld [vmem:[#allocation6 + $0xb8] sm:$0xff]
    %v86 = vld [vmem:[#allocation6 + $0xc0] sm:$0xff]
    %v87 = vld [vmem:[#allocation6 + $0xc8] sm:$0xff]
    %v88 = vld [vmem:[#allocation6 + $0xd0] sm:$0xff]
    %v89 = vld [vmem:[#allocation6 + $0xd8] sm:$0xff]
    %v90 = vld [vmem:[#allocation6 + $0xe0] sm:$0xff]
    %v91 = vld [vmem:[#allocation6 + $0xe8] sm:$0xff]
    %v92 = vld [vmem:[#allocation6 + $0xf0] sm:$0xff]
    %v93 = vld [vmem:[#allocation6 + $0xf8] sm:$0xff]
    %v94 = vld [vmem:[#allocation6 + $0x100] sm:$0xff]
    %v95 = vld [vmem:[#allocation6 + $0x108] sm:$0xff]
    %v96 = vld [vmem:[#allocation6 + $0x110] sm:$0xff]
    %v97 = vld [vmem:[#allocation6 + $0x118] sm:$0xff]
    %v98 = vld [vmem:[#allocation6 + $0x120] sm:$0xff]
    %v99 = vld [vmem:[#allocation6 + $0x128] sm:$0xff]
    %v100 = vld [vmem:[#allocation6 + $0x130] sm:$0xff]
    %v101 = vld [vmem:[#allocation2] sm:$0x3]
    %v102 = vperm.slane %v101, 0
    %v103 = vlaneseq
    %v104 = vshrl.u32 %v103, 7
    %106 = vset.pattern.permute.xlu0 %v104
    %107 = vperm.xlu0 %106, %v102
    %v108 = vpop.permute.xlu0 %107
    %v109 = vperm.slane %v101, 1
    %v110 = vlaneseq
    %v111 = vshrl.u32 %v110, 7
    %113 = vset.pattern.permute.xlu0 %v111
    %114 = vperm.xlu0 %113, %v109
    %v115 = vpop.permute.xlu0 %114
    %v116 = vld [vmem:[%s1] sm:$0x3]
    %v117 = vperm.slane %v116, 0
    %v118 = vlaneseq
    %v119 = vshrl.u32 %v118, 7
    %121 = vset.pattern.permute.xlu0 %v119
    %122 = vperm.xlu0 %121, %v117
    %v123 = vpop.permute.xlu0 %122
    %v124 = vperm.slane %v116, 1
    %v125 = vlaneseq
    %v126 = vshrl.u32 %v125, 7
    %128 = vset.pattern.permute.xlu0 %v126
    %129 = vperm.xlu0 %128, %v124
    %v130 = vpop.permute.xlu0 %129
    %v131 = vadd.s32 %v123, 100
    %v132 = vadd.s32 %v130, 100
    %v133 = vlaneseq
    %v134 = vshrl.u32 %v133, 7
    %v135 = vadd.s32 %v134, 102
    %v136 = vlaneseq
    %v137 = vand.u32 %v136, 127
    %vm138 = vcmp.eq.s32.totalorder %v137, %v108
    %vm139 = vcmp.eq.s32.totalorder %v137, %v115
    %vm140 = vcmp.eq.s32.totalorder %v137, %v131
    %vm141 = vcmp.eq.s32.totalorder %v137, %v132
    %vm142 = vmor %vm138, %vm140
    %vm143 = vmor %vm139, %vm141
    %vm144 = vcmp.eq.s32.totalorder %v137, %v135
    %vm145 = vmor %vm142, %vm144
    %vm146 = vmor %vm143, %vm144
    %v147 = vsel %vm145, 1, 0
    %v148 = vsel %vm146, 1, 0
    %v149 = vcvt.s32.f32 %v147
    %v150 = vcvt.s32.f32 %v148
    %vm151 = vcmask 982016
    %v153 = vsel %vm151, %v149, 0
    %v156 = vsel %vm151, %v150, 0
    %158 = vmatpush.msra.mxu0 0.0
    %159 = vmatpush.msra.mxu0 %v100
    %160 = vmatpush.msra.mxu0 %v99
    %161 = vmatpush.msra.mxu0 %v98
    %162 = vmatpush.msra.mxu0 %v97
    %163 = vmatpush.msra.mxu0 %v96
    %164 = vmatpush.msra.mxu0 %v95
    %165 = vmatpush.msra.mxu0 %v94
    %166 = vmatpush.msra.mxu0 %v93
    %167 = vmatpush.msra.mxu0 %v92
    %168 = vmatpush.msra.mxu0 %v91
    %169 = vmatpush.msra.mxu0 %v90
    %170 = vmatpush.msra.mxu0 %v89
    %171 = vmatpush.msra.mxu0 %v88
    %172 = vmatpush.msra.mxu0 %v87
    %173 = vmatpush.msra.mxu0 %v86
    %174 = vmatmul.f32.gmra.mxu0 %v153
    %v175 = vpop.f32.mrf.mxu0
    %v176 = vadd.f32 0.0, %v175
    %177 = vmatmul.f32.gmra.mxu0 %v156
    %v178 = vpop.f32.mrf.mxu0
    %v179 = vadd.f32 0.0, %v178
    %180 = vdwg.mxu0
    %vm181 = vcmask 261120
    %v182 = vsel %vm181, %v176, 0.0
    %183 = vadd.xlane.f32.xlu0 %v182
    %v184 = vpop.xlane.xlu0 %183
    %v185 = vsel %vm181, %v179, 0.0
    %186 = vadd.xlane.f32.xlu0 %v185
    %v187 = vpop.xlane.xlu0 %186
    %v188 = vrcp.pop 32.0
    %v189 = vmul.f32 32.0, %v188
    %v190 = vsub.f32 1.0, %v189
    %v191 = vmul.f32 %v188, %v190
    %v192 = vadd.f32 %v188, %v191
    %vm193 = vweird.f32 %v188
    %v194 = vsel %vm193, %v188, %v192
    %v195 = vmul.f32 %v184, %v194
    %v196 = vmul.f32 %v187, %v194
    %v197 = vsub.f32 %v176, %v195
    %v198 = vsub.f32 %v179, %v196
    %v199 = vmul.f32 %v197, %v197
    %v200 = vmul.f32 %v198, %v198
    %v201 = vsel %vm181, %v199, 0.0
    %202 = vadd.xlane.f32.xlu0 %v201
    %v203 = vpop.xlane.xlu0 %202
    %v204 = vsel %vm181, %v200, 0.0
    %205 = vadd.xlane.f32.xlu0 %v204
    %v206 = vpop.xlane.xlu0 %205
    %v207 = vmul.f32 %v203, %v194
    %v208 = vmul.f32 %v206, %v194
    %v209 = vadd.f32 %v207, 1e-12
    %v210 = vadd.f32 %v208, 1e-12
    %v211 = vrsqrt.pop %v209
    %v212 = vmul.f32 %v211, %v209
    %v213 = vmul.f32 %v212, %v211
    %v214 = vmul.f32 0.5, %v213
    %v215 = vsub.f32 1.5, %v214
    %v216 = vmul.f32 %v211, %v215
    %vm217 = vweird.f32 %v209
    %vm218 = vweird.f32 %v211
    %vm219 = vmor %vm217, %vm218
    %v220 = vsel %vm219, %v211, %v216
    %v221 = vrsqrt.pop %v210
    %v222 = vmul.f32 %v221, %v210
    %v223 = vmul.f32 %v222, %v221
    %v224 = vmul.f32 0.5, %v223
    %v225 = vsub.f32 1.5, %v224
    %v226 = vmul.f32 %v221, %v225
    %vm227 = vweird.f32 %v210
    %vm228 = vweird.f32 %v221
    %vm229 = vmor %vm227, %vm228
    %v230 = vsel %vm229, %v221, %v226
    %v231 = vmul.f32 %v197, %v220
    %v232 = vmul.f32 %v198, %v230
    %v233 = vperm.slane %v60, 0
    %v234 = vmul.f32 %v231, %v233
    %v235 = vmul.f32 %v232, %v233
    %v236 = vperm.slane %v60, 1
    %v237 = vadd.f32 %v234, %v236
    %v238 = vadd.f32 %v235, %v236
    %v239 = vld [vmem:[#allocation4] sm:$0x3]
    %v240 = vsub.f32 1.0, %v239
    %v241 = vmul.f32 %v240, -1e+09
    %v243 = vrot.slane %v241, 1
    %v244 = vperm.slane %v60, 2
    %v246 = vsel %vm181, %v237, 0
    %v249 = vsel %vm181, %v238, 0
    %251 = vmatpush.msra.mxu0 0.0
    %252 = vmatpush.msra.mxu0 0.0
    %253 = vmatpush.msra.mxu0 0.0
    %254 = vmatpush.msra.mxu0 0.0
    %255 = vmatpush.msra.mxu0 0.0
    %256 = vmatpush.msra.mxu0 0.0
    %257 = vmatpush.msra.mxu0 0.0
    %258 = vmatpush.msra.mxu0 0.0
    %259 = vmatpush.msra.mxu0 0.0
    %260 = vmatpush.msra.mxu0 0.0
    %261 = vmatpush.msra.mxu0 0.0
    %262 = vmatpush.msra.mxu0 0.0
    %263 = vmatpush.msra.mxu0 %v65
    %264 = vmatpush.msra.mxu0 %v64
    %265 = vmatpush.msra.mxu0 %v63
    %266 = vmatpush.msra.mxu0 %v62
    %267 = vmatmul.f32.gmra.mxu0 %v246
    %v268 = vpop.f32.mrf.mxu0
    %v269 = vadd.f32 %v244, %v268
    %270 = vmatmul.f32.gmra.mxu0 %v249
    %v271 = vpop.f32.mrf.mxu0
    %v272 = vadd.f32 %v244, %v271
    %273 = vdwg.mxu0
    %275 = vrot.lane.b32.xlu0 %v269, 96
    %v276 = vpop.permute.xlu0 %275
    %vm277 = vcmask 130048
    %v278 = vsel %vm277, %v269, 0
    %v280 = vsel %vm277, %v276, 0
    %282 = vmatpush.xpose.msra.mxu0 0.0
    %283 = vmatpush.xpose.msra.mxu0 0.0
    %284 = vmatpush.xpose.msra.mxu0 0.0
    %285 = vmatpush.xpose.msra.mxu0 0.0
    %286 = vmatpush.xpose.msra.mxu0 0.0
    %287 = vmatpush.xpose.msra.mxu0 0.0
    %288 = vmatpush.xpose.msra.mxu0 0.0
    %289 = vmatpush.xpose.msra.mxu0 0.0
    %290 = vmatpush.xpose.msra.mxu0 0.0
    %291 = vmatpush.xpose.msra.mxu0 0.0
    %292 = vmatpush.xpose.msra.mxu0 0.0
    %293 = vmatpush.xpose.msra.mxu0 0.0
    %294 = vmatpush.xpose.msra.mxu0 0.0
    %295 = vmatpush.xpose.msra.mxu0 0.0
    %296 = vmatpush.xpose.msra.mxu0 0.0
    %297 = vmatpush.xpose.msra.mxu0 %v280
    %298 = vmatmul.f32.gmra.mxu0 %v278
    %v299 = vpop.f32.mrf.mxu0
    %v300 = vadd.f32 0.0, %v299
    %301 = vdwg.mxu0
    %303 = vrot.lane.b32.xlu0 %v272, 96
    %v304 = vpop.permute.xlu0 %303
    %v305 = vsel %vm277, %v272, 0
    %v307 = vsel %vm277, %v304, 0
    %309 = vmatpush.xpose.msra.mxu0 0.0
    %310 = vmatpush.xpose.msra.mxu0 0.0
    %311 = vmatpush.xpose.msra.mxu0 0.0
    %312 = vmatpush.xpose.msra.mxu0 0.0
    %313 = vmatpush.xpose.msra.mxu0 0.0
    %314 = vmatpush.xpose.msra.mxu0 0.0
    %315 = vmatpush.xpose.msra.mxu0 0.0
    %316 = vmatpush.xpose.msra.mxu0 0.0
    %317 = vmatpush.xpose.msra.mxu0 0.0
    %318 = vmatpush.xpose.msra.mxu0 0.0
    %319 = vmatpush.xpose.msra.mxu0 0.0
    %320 = vmatpush.xpose.msra.mxu0 0.0
    %321 = vmatpush.xpose.msra.mxu0 0.0
    %322 = vmatpush.xpose.msra.mxu0 0.0
    %323 = vmatpush.xpose.msra.mxu0 0.0
    %324 = vmatpush.xpose.msra.mxu0 %v307
    %325 = vmatmul.f32.gmra.mxu0 %v305
    %v326 = vpop.f32.mrf.mxu0
    %v327 = vadd.f32 0.0, %v326
    %328 = vdwg.mxu0
    %v329 = vmul.f32 %v300, 0.25
    %v330 = vmul.f32 %v327, 0.25
    %v331 = vperm.slane %v241, 0
    %v332 = vperm.slane %v243, 0
    %v335 = vadd.f32 %v329, %v331
    %v336 = vadd.f32 %v330, %v332
    %vm337 = vcmask 64512
    %v338 = vsel %vm337, %v335, -inf
    %339 = vmax.xlane.f32.xlu0 %v338
    %v340 = vpop.xlane.xlu0 %339
    %v341 = vsel %vm337, %v336, -inf
    %342 = vmax.xlane.f32.xlu0 %v341
    %v343 = vpop.xlane.xlu0 %342
    %v344 = vsub.f32 %v335, %v340
    %v345 = vsub.f32 %v336, %v343
    %v346 = vmul.f32 %v344, 1.442695
    %v347 = vpow.pop %v346
    %v348 = vmul.f32 %v345, 1.442695
    %v349 = vpow.pop %v348
    %v350 = vsel %vm337, %v347, 0.0
    %351 = vadd.xlane.f32.xlu0 %v350
    %v352 = vpop.xlane.xlu0 %351
    %v353 = vsel %vm337, %v349, 0.0
    %354 = vadd.xlane.f32.xlu0 %v353
    %v355 = vpop.xlane.xlu0 %354
    %v356 = vrcp.pop %v352
    %v357 = vrcp.pop %v355
    %v358 = vmul.f32 %v347, %v356
    %v359 = vmul.f32 %v349, %v357
    %360 = vrot.lane.b32.xlu0 %v269, 64
    %v361 = vpop.permute.xlu0 %360
    %v364 = vsel %vm337, %v358, 0
    %366 = vmatpush.msra.mxu0 0.0
    %367 = vmatpush.msra.mxu0 0.0
    %368 = vmatpush.msra.mxu0 0.0
    %369 = vmatpush.msra.mxu0 0.0
    %370 = vmatpush.msra.mxu0 0.0
    %371 = vmatpush.msra.mxu0 0.0
    %372 = vmatpush.msra.mxu0 0.0
    %373 = vmatpush.msra.mxu0 0.0
    %374 = vmatpush.msra.mxu0 0.0
    %375 = vmatpush.msra.mxu0 0.0
    %376 = vmatpush.msra.mxu0 0.0
    %377 = vmatpush.msra.mxu0 0.0
    %378 = vmatpush.msra.mxu0 0.0
    %379 = vmatpush.msra.mxu0 0.0
    %380 = vmatpush.msra.mxu0 0.0
    %381 = vmatpush.msra.mxu0 %v361
    %382 = vmatmul.f32.gmra.mxu0 %v364
    %v383 = vpop.f32.mrf.mxu0
    %v384 = vadd.f32 0.0, %v383
    %385 = vdwg.mxu0
    %386 = vrot.lane.b32.xlu0 %v272, 64
    %v387 = vpop.permute.xlu0 %386
    %v390 = vsel %vm337, %v359, 0
    %392 = vmatpush.msra.mxu0 0.0
    %393 = vmatpush.msra.mxu0 0.0
    %394 = vmatpush.msra.mxu0 0.0
    %395 = vmatpush.msra.mxu0 0.0
    %396 = vmatpush.msra.mxu0 0.0
    %397 = vmatpush.msra.mxu0 0.0
    %398 = vmatpush.msra.mxu0 0.0
    %399 = vmatpush.msra.mxu0 0.0
    %400 = vmatpush.msra.mxu0 0.0
    %401 = vmatpush.msra.mxu0 0.0
    %402 = vmatpush.msra.mxu0 0.0
    %403 = vmatpush.msra.mxu0 0.0
    %404 = vmatpush.msra.mxu0 0.0
    %405 = vmatpush.msra.mxu0 0.0
    %406 = vmatpush.msra.mxu0 0.0
    %407 = vmatpush.msra.mxu0 %v387
    %408 = vmatmul.f32.gmra.mxu0 %v390
    %v409 = vpop.f32.mrf.mxu0
    %v410 = vadd.f32 0.0, %v409
    %411 = vdwg.mxu0
    %412 = vrot.lane.b32.xlu0 %v269, 112
    %v413 = vpop.permute.xlu0 %412
    %414 = vrot.lane.b32.xlu0 %v269, 80
    %v415 = vpop.permute.xlu0 %414
    %v416 = vsel %vm277, %v413, 0
    %v418 = vsel %vm277, %v415, 0
    %420 = vmatpush.xpose.msra.mxu0 0.0
    %421 = vmatpush.xpose.msra.mxu0 0.0
    %422 = vmatpush.xpose.msra.mxu0 0.0
    %423 = vmatpush.xpose.msra.mxu0 0.0
    %424 = vmatpush.xpose.msra.mxu0 0.0
    %425 = vmatpush.xpose.msra.mxu0 0.0
    %426 = vmatpush.xpose.msra.mxu0 0.0
    %427 = vmatpush.xpose.msra.mxu0 0.0
    %428 = vmatpush.xpose.msra.mxu0 0.0
    %429 = vmatpush.xpose.msra.mxu0 0.0
    %430 = vmatpush.xpose.msra.mxu0 0.0
    %431 = vmatpush.xpose.msra.mxu0 0.0
    %432 = vmatpush.xpose.msra.mxu0 0.0
    %433 = vmatpush.xpose.msra.mxu0 0.0
    %434 = vmatpush.xpose.msra.mxu0 0.0
    %435 = vmatpush.xpose.msra.mxu0 %v418
    %436 = vmatmul.f32.gmra.mxu0 %v416
    %v437 = vpop.f32.mrf.mxu0
    %v438 = vadd.f32 0.0, %v437
    %439 = vdwg.mxu0
    %440 = vrot.lane.b32.xlu0 %v272, 112
    %v441 = vpop.permute.xlu0 %440
    %442 = vrot.lane.b32.xlu0 %v272, 80
    %v443 = vpop.permute.xlu0 %442
    %v444 = vsel %vm277, %v441, 0
    %v446 = vsel %vm277, %v443, 0
    %448 = vmatpush.xpose.msra.mxu0 0.0
    %449 = vmatpush.xpose.msra.mxu0 0.0
    %450 = vmatpush.xpose.msra.mxu0 0.0
    %451 = vmatpush.xpose.msra.mxu0 0.0
    %452 = vmatpush.xpose.msra.mxu0 0.0
    %453 = vmatpush.xpose.msra.mxu0 0.0
    %454 = vmatpush.xpose.msra.mxu0 0.0
    %455 = vmatpush.xpose.msra.mxu0 0.0
    %456 = vmatpush.xpose.msra.mxu0 0.0
    %457 = vmatpush.xpose.msra.mxu0 0.0
    %458 = vmatpush.xpose.msra.mxu0 0.0
    %459 = vmatpush.xpose.msra.mxu0 0.0
    %460 = vmatpush.xpose.msra.mxu0 0.0
    %461 = vmatpush.xpose.msra.mxu0 0.0
    %462 = vmatpush.xpose.msra.mxu0 0.0
    %463 = vmatpush.xpose.msra.mxu0 %v446
    %464 = vmatmul.f32.gmra.mxu0 %v444
    %v465 = vpop.f32.mrf.mxu0
    %v466 = vadd.f32 0.0, %v465
    %467 = vdwg.mxu0
    %v468 = vmul.f32 %v438, 0.25
    %v469 = vmul.f32 %v466, 0.25
    %v470 = vadd.f32 %v468, %v331
    %v471 = vadd.f32 %v469, %v332
    %v472 = vsel %vm337, %v470, -inf
    %473 = vmax.xlane.f32.xlu0 %v472
    %v474 = vpop.xlane.xlu0 %473
    %v475 = vsel %vm337, %v471, -inf
    %476 = vmax.xlane.f32.xlu0 %v475
    %v477 = vpop.xlane.xlu0 %476
    %v478 = vsub.f32 %v470, %v474
    %v479 = vsub.f32 %v471, %v477
    %v480 = vmul.f32 %v478, 1.442695
    %v481 = vpow.pop %v480
    %v482 = vmul.f32 %v479, 1.442695
    %v483 = vpow.pop %v482
    %v484 = vsel %vm337, %v481, 0.0
    %485 = vadd.xlane.f32.xlu0 %v484
    %v486 = vpop.xlane.xlu0 %485
    %v487 = vsel %vm337, %v483, 0.0
    %488 = vadd.xlane.f32.xlu0 %v487
    %v489 = vpop.xlane.xlu0 %488
    %v490 = vrcp.pop %v486
    %v491 = vrcp.pop %v489
    %v492 = vmul.f32 %v481, %v490
    %v493 = vmul.f32 %v483, %v491
    %494 = vrot.lane.b32.xlu0 %v269, 48
    %v495 = vpop.permute.xlu0 %494
    %v498 = vsel %vm337, %v492, 0
    %500 = vmatpush.msra.mxu0 0.0
    %501 = vmatpush.msra.mxu0 0.0
    %502 = vmatpush.msra.mxu0 0.0
    %503 = vmatpush.msra.mxu0 0.0
    %504 = vmatpush.msra.mxu0 0.0
    %505 = vmatpush.msra.mxu0 0.0
    %506 = vmatpush.msra.mxu0 0.0
    %507 = vmatpush.msra.mxu0 0.0
    %508 = vmatpush.msra.mxu0 0.0
    %509 = vmatpush.msra.mxu0 0.0
    %510 = vmatpush.msra.mxu0 0.0
    %511 = vmatpush.msra.mxu0 0.0
    %512 = vmatpush.msra.mxu0 0.0
    %513 = vmatpush.msra.mxu0 0.0
    %514 = vmatpush.msra.mxu0 0.0
    %515 = vmatpush.msra.mxu0 %v495
    %516 = vmatmul.f32.gmra.mxu0 %v498
    %v517 = vpop.f32.mrf.mxu0
    %v518 = vadd.f32 0.0, %v517
    %519 = vdwg.mxu0
    %520 = vrot.lane.b32.xlu0 %v272, 48
    %v521 = vpop.permute.xlu0 %520
    %v524 = vsel %vm337, %v493, 0
    %526 = vmatpush.msra.mxu0 0.0
    %527 = vmatpush.msra.mxu0 0.0
    %528 = vmatpush.msra.mxu0 0.0
    %529 = vmatpush.msra.mxu0 0.0
    %530 = vmatpush.msra.mxu0 0.0
    %531 = vmatpush.msra.mxu0 0.0
    %532 = vmatpush.msra.mxu0 0.0
    %533 = vmatpush.msra.mxu0 0.0
    %534 = vmatpush.msra.mxu0 0.0
    %535 = vmatpush.msra.mxu0 0.0
    %536 = vmatpush.msra.mxu0 0.0
    %537 = vmatpush.msra.mxu0 0.0
    %538 = vmatpush.msra.mxu0 0.0
    %539 = vmatpush.msra.mxu0 0.0
    %540 = vmatpush.msra.mxu0 0.0
    %541 = vmatpush.msra.mxu0 %v521
    %542 = vmatmul.f32.gmra.mxu0 %v524
    %v543 = vpop.f32.mrf.mxu0
    %v544 = vadd.f32 0.0, %v543
    %545 = vdwg.mxu0
    %548 = vrot.lane.b32.xlu0 %v518, 16
    %v549 = vpop.permute.xlu0 %548
    %550 = vrot.lane.b32.xlu0 %v544, 16
    %v551 = vpop.permute.xlu0 %550
    %v554 = vsel %vm277, %v384, %v549
    %v555 = vsel %vm277, %v410, %v551
    %v556 = vperm.slane %v60, 3
    %v558 = vsel %vm181, %v554, 0
    %v561 = vsel %vm181, %v555, 0
    %563 = vmatpush.msra.mxu0 0.0
    %564 = vmatpush.msra.mxu0 0.0
    %565 = vmatpush.msra.mxu0 0.0
    %566 = vmatpush.msra.mxu0 0.0
    %567 = vmatpush.msra.mxu0 0.0
    %568 = vmatpush.msra.mxu0 0.0
    %569 = vmatpush.msra.mxu0 0.0
    %570 = vmatpush.msra.mxu0 0.0
    %571 = vmatpush.msra.mxu0 0.0
    %572 = vmatpush.msra.mxu0 0.0
    %573 = vmatpush.msra.mxu0 0.0
    %574 = vmatpush.msra.mxu0 0.0
    %575 = vmatpush.msra.mxu0 %v69
    %576 = vmatpush.msra.mxu0 %v68
    %577 = vmatpush.msra.mxu0 %v67
    %578 = vmatpush.msra.mxu0 %v66
    %579 = vmatmul.f32.gmra.mxu0 %v558
    %v580 = vpop.f32.mrf.mxu0
    %v581 = vadd.f32 %v556, %v580
    %582 = vmatmul.f32.gmra.mxu0 %v561
    %v583 = vpop.f32.mrf.mxu0
    %v584 = vadd.f32 %v556, %v583
    %585 = vdwg.mxu0
    %v586 = vadd.f32 %v237, %v581
    %v587 = vadd.f32 %v238, %v584
    %v588 = vsel %vm181, %v586, 0.0
    %589 = vadd.xlane.f32.xlu0 %v588
    %v590 = vpop.xlane.xlu0 %589
    %v591 = vsel %vm181, %v587, 0.0
    %592 = vadd.xlane.f32.xlu0 %v591
    %v593 = vpop.xlane.xlu0 %592
    %v594 = vmul.f32 %v590, %v194
    %v595 = vmul.f32 %v593, %v194
    %v596 = vsub.f32 %v586, %v594
    %v597 = vsub.f32 %v587, %v595
    %v598 = vmul.f32 %v596, %v596
    %v599 = vmul.f32 %v597, %v597
    %v600 = vsel %vm181, %v598, 0.0
    %601 = vadd.xlane.f32.xlu0 %v600
    %v602 = vpop.xlane.xlu0 %601
    %v603 = vsel %vm181, %v599, 0.0
    %604 = vadd.xlane.f32.xlu0 %v603
    %v605 = vpop.xlane.xlu0 %604
    %v606 = vmul.f32 %v602, %v194
    %v607 = vmul.f32 %v605, %v194
    %v608 = vadd.f32 %v606, 1e-12
    %v609 = vadd.f32 %v607, 1e-12
    %v610 = vrsqrt.pop %v608
    %v611 = vmul.f32 %v610, %v608
    %v612 = vmul.f32 %v611, %v610
    %v613 = vmul.f32 0.5, %v612
    %v614 = vsub.f32 1.5, %v613
    %v615 = vmul.f32 %v610, %v614
    %vm616 = vweird.f32 %v608
    %vm617 = vweird.f32 %v610
    %vm618 = vmor %vm616, %vm617
    %v619 = vsel %vm618, %v610, %v615
    %v620 = vrsqrt.pop %v609
    %v621 = vmul.f32 %v620, %v609
    %v622 = vmul.f32 %v621, %v620
    %v623 = vmul.f32 0.5, %v622
    %v624 = vsub.f32 1.5, %v623
    %v625 = vmul.f32 %v620, %v624
    %vm626 = vweird.f32 %v609
    %vm627 = vweird.f32 %v620
    %vm628 = vmor %vm626, %vm627
    %v629 = vsel %vm628, %v620, %v625
    %v630 = vmul.f32 %v596, %v619
    %v631 = vmul.f32 %v597, %v629
    %v632 = vperm.slane %v60, 4
    %v633 = vmul.f32 %v630, %v632
    %v634 = vmul.f32 %v631, %v632
    %v635 = vperm.slane %v60, 5
    %v636 = vadd.f32 %v633, %v635
    %v637 = vadd.f32 %v634, %v635
    %v638 = vperm.slane %v60, 6
    %v640 = vsel %vm181, %v636, 0
    %v643 = vsel %vm181, %v637, 0
    %645 = vmatpush.msra.mxu0 0.0
    %646 = vmatpush.msra.mxu0 0.0
    %647 = vmatpush.msra.mxu0 0.0
    %648 = vmatpush.msra.mxu0 0.0
    %649 = vmatpush.msra.mxu0 0.0
    %650 = vmatpush.msra.mxu0 0.0
    %651 = vmatpush.msra.mxu0 0.0
    %652 = vmatpush.msra.mxu0 0.0
    %653 = vmatpush.msra.mxu0 0.0
    %654 = vmatpush.msra.mxu0 0.0
    %655 = vmatpush.msra.mxu0 0.0
    %656 = vmatpush.msra.mxu0 0.0
    %657 = vmatpush.msra.mxu0 %v73
    %658 = vmatpush.msra.mxu0 %v72
    %659 = vmatpush.msra.mxu0 %v71
    %660 = vmatpush.msra.mxu0 %v70
    %661 = vmatmul.f32.gmra.mxu0 %v640
    %v662 = vpop.f32.mrf.mxu0
    %v663 = vadd.f32 %v638, %v662
    %664 = vmatmul.f32.gmra.mxu0 %v643
    %v665 = vpop.f32.mrf.mxu0
    %v666 = vadd.f32 %v638, %v665
    %667 = vdwg.mxu0
    %v668 = vmul.f32 %v663, %v663
    %v669 = vmul.f32 %v666, %v666
    %v670 = vmul.f32 %v663, %v668
    %v671 = vmul.f32 %v666, %v669
    %v672 = vmul.f32 %v670, 0.044715
    %v673 = vmul.f32 %v671, 0.044715
    %v674 = vadd.f32 %v663, %v672
    %v675 = vadd.f32 %v666, %v673
    %v676 = vmul.f32 %v674, 0.7978846
    %v677 = vmul.f32 %v675, 0.7978846
    %v678 = vtanh.pop %v676
    %v679 = vtanh.pop %v677
    %v680 = vadd.f32 %v678, 1.0
    %v681 = vadd.f32 %v679, 1.0
    %v682 = vmul.f32 %v680, 0.5
    %v683 = vmul.f32 %v681, 0.5
    %v684 = vmul.f32 %v663, %v682
    %v685 = vmul.f32 %v666, %v683
    %v686 = vperm.slane %v60, 7
    %vm687 = vcmask 523264
    %v689 = vsel %vm687, %v684, 0
    %v692 = vsel %vm687, %v685, 0
    %694 = vmatpush.msra.mxu0 0.0
    %695 = vmatpush.msra.mxu0 0.0
    %696 = vmatpush.msra.mxu0 0.0
    %697 = vmatpush.msra.mxu0 0.0
    %698 = vmatpush.msra.mxu0 0.0
    %699 = vmatpush.msra.mxu0 0.0
    %700 = vmatpush.msra.mxu0 0.0
    %701 = vmatpush.msra.mxu0 0.0
    %702 = vmatpush.msra.mxu0 %v85
    %703 = vmatpush.msra.mxu0 %v84
    %704 = vmatpush.msra.mxu0 %v83
    %705 = vmatpush.msra.mxu0 %v82
    %706 = vmatpush.msra.mxu0 %v81
    %707 = vmatpush.msra.mxu0 %v80
    %708 = vmatpush.msra.mxu0 %v79
    %709 = vmatpush.msra.mxu0 %v78
    %710 = vmatmul.f32.gmra.mxu0 %v689
    %v711 = vpop.f32.mrf.mxu0
    %v712 = vadd.f32 %v686, %v711
    %713 = vmatmul.f32.gmra.mxu0 %v692
    %v714 = vpop.f32.mrf.mxu0
    %v715 = vadd.f32 %v686, %v714
    %716 = vdwg.mxu0
    %v717 = vadd.f32 %v636, %v712
    %v718 = vadd.f32 %v637, %v715
    %v719 = vsel %vm181, %v717, 0.0
    %720 = vadd.xlane.f32.xlu0 %v719
    %v721 = vpop.xlane.xlu0 %720
    %v722 = vsel %vm181, %v718, 0.0
    %723 = vadd.xlane.f32.xlu0 %v722
    %v724 = vpop.xlane.xlu0 %723
    %v725 = vmul.f32 %v721, %v194
    %v726 = vmul.f32 %v724, %v194
    %v727 = vsub.f32 %v717, %v725
    %v728 = vsub.f32 %v718, %v726
    %v729 = vmul.f32 %v727, %v727
    %v730 = vmul.f32 %v728, %v728
    %v731 = vsel %vm181, %v729, 0.0
    %732 = vadd.xlane.f32.xlu0 %v731
    %v733 = vpop.xlane.xlu0 %732
    %v734 = vsel %vm181, %v730, 0.0
    %735 = vadd.xlane.f32.xlu0 %v734
    %v736 = vpop.xlane.xlu0 %735
    %v737 = vmul.f32 %v733, %v194
    %v738 = vmul.f32 %v736, %v194
    %v739 = vadd.f32 %v737, 1e-12
    %v740 = vadd.f32 %v738, 1e-12
    %v741 = vrsqrt.pop %v739
    %v742 = vmul.f32 %v741, %v739
    %v743 = vmul.f32 %v742, %v741
    %v744 = vmul.f32 0.5, %v743
    %v745 = vsub.f32 1.5, %v744
    %v746 = vmul.f32 %v741, %v745
    %vm747 = vweird.f32 %v739
    %vm748 = vweird.f32 %v741
    %vm749 = vmor %vm747, %vm748
    %v750 = vsel %vm749, %v741, %v746
    %v751 = vrsqrt.pop %v740
    %v752 = vmul.f32 %v751, %v740
    %v753 = vmul.f32 %v752, %v751
    %v754 = vmul.f32 0.5, %v753
    %v755 = vsub.f32 1.5, %v754
    %v756 = vmul.f32 %v751, %v755
    %vm757 = vweird.f32 %v740
    %vm758 = vweird.f32 %v751
    %vm759 = vmor %vm757, %vm758
    %v760 = vsel %vm759, %v751, %v756
    %v761 = vmul.f32 %v727, %v750
    %v762 = vmul.f32 %v728, %v760
    %v763 = vperm.slane %v61, 0
    %v764 = vmul.f32 %v761, %v763
    %v765 = vmul.f32 %v762, %v763
    %v766 = vperm.slane %v61, 1
    %v767 = vadd.f32 %v764, %v766
    %v768 = vadd.f32 %v765, %v766
    %v769 = vperm.slane %v61, 2
    %v771 = vsel %vm181, %v767, 0
    %v774 = vsel %vm181, %v768, 0
    %776 = vmatpush.msra.mxu0 0.0
    %777 = vmatpush.msra.mxu0 0.0
    %778 = vmatpush.msra.mxu0 0.0
    %779 = vmatpush.msra.mxu0 0.0
    %780 = vmatpush.msra.mxu0 0.0
    %781 = vmatpush.msra.mxu0 0.0
    %782 = vmatpush.msra.mxu0 0.0
    %783 = vmatpush.msra.mxu0 0.0
    %784 = vmatpush.msra.mxu0 0.0
    %785 = vmatpush.msra.mxu0 0.0
    %786 = vmatpush.msra.mxu0 0.0
    %787 = vmatpush.msra.mxu0 0.0
    %788 = vmatpush.msra.mxu0 %v77
    %789 = vmatpush.msra.mxu0 %v76
    %790 = vmatpush.msra.mxu0 %v75
    %791 = vmatpush.msra.mxu0 %v74
    %792 = vmatmul.f32.gmra.mxu0 %v771
    %v793 = vpop.f32.mrf.mxu0
    %v794 = vadd.f32 %v769, %v793
    %795 = vmatmul.f32.gmra.mxu0 %v774
    %v796 = vpop.f32.mrf.mxu0
    %v797 = vadd.f32 %v769, %v796
    %798 = vdwg.mxu0
    %v799 = vtanh.pop %v794
    %v800 = vtanh.pop %v797
    %v802 = vrot.slane %v61, 3
    %v803 = vsel %vm181, %v802, 0
    %v806 = vsel %vm181, %v799, 0
    %v809 = vsel %vm181, %v800, 0
    %811 = vmatpush.xpose.msra.mxu0 0.0
    %812 = vmatpush.xpose.msra.mxu0 0.0
    %813 = vmatpush.xpose.msra.mxu0 0.0
    %814 = vmatpush.xpose.msra.mxu0 0.0
    %815 = vmatpush.xpose.msra.mxu0 0.0
    %816 = vmatpush.xpose.msra.mxu0 0.0
    %817 = vmatpush.xpose.msra.mxu0 0.0
    %818 = vmatpush.xpose.msra.mxu0 0.0
    %819 = vmatpush.xpose.msra.mxu0 0.0
    %820 = vmatpush.xpose.msra.mxu0 0.0
    %821 = vmatpush.xpose.msra.mxu0 0.0
    %822 = vmatpush.xpose.msra.mxu0 0.0
    %823 = vmatpush.xpose.msra.mxu0 0.0
    %824 = vmatpush.xpose.msra.mxu0 0.0
    %825 = vmatpush.xpose.msra.mxu0 %v809
    %826 = vmatpush.xpose.msra.mxu0 %v806
    %827 = vmatmul.f32.gmra.mxu0 %v803
    %v828 = vpop.f32.mrf.mxu0
    %v829 = vadd.f32 0.0, %v828
    %830 = vdwg.mxu0
    %v831 = vadd.s32 %v134, 8
    %vm832 = vcmp.lt.s32.totalorder %v137, 2
    %v833 = vmul.u32 %v137, 8
    %vm834 = vcmp.eq.s32.totalorder %v134, %v833
    %vm835 = vcmp.eq.s32.totalorder %v831, %v833
    %vm836 = vmand %vm832, %vm834
    %vm837 = vmand %vm832, %vm835
    %v838 = vsel %vm836, 1, 0
    %v839 = vsel %vm837, 1, 0
    %v840 = vcvt.s32.f32 %v838
    %v841 = vcvt.s32.f32 %v839
    %842 = vset.pattern.permute.xlu0 0
    %843 = vperm.xlu0 %842, %v61
    %v844 = vpop.permute.xlu0 %843
    %v845 = vrot.slane %v844, 4
    %v848 = vsel %vm277, %v829, 0
    %850 = vmatpush.msra.mxu0 0.0
    %851 = vmatpush.msra.mxu0 0.0
    %852 = vmatpush.msra.mxu0 0.0
    %853 = vmatpush.msra.mxu0 0.0
    %854 = vmatpush.msra.mxu0 0.0
    %855 = vmatpush.msra.mxu0 0.0
    %856 = vmatpush.msra.mxu0 0.0
    %857 = vmatpush.msra.mxu0 0.0
    %858 = vmatpush.msra.mxu0 0.0
    %859 = vmatpush.msra.mxu0 0.0
    %860 = vmatpush.msra.mxu0 0.0
    %861 = vmatpush.msra.mxu0 0.0
    %862 = vmatpush.msra.mxu0 0.0
    %863 = vmatpush.msra.mxu0 0.0
    %864 = vmatpush.msra.mxu0 %v841
    %865 = vmatpush.msra.mxu0 %v840
    %866 = vmatmul.f32.gmra.mxu0 %v848
    %v867 = vpop.f32.mrf.mxu0
    %v868 = vadd.f32 %v845, %v867
    %869 = vdwg.mxu0
    %v870 = vxor.u32 %v868, 2147483648
    %v871 = vmul.f32 %v870, 1.442695
    %v872 = vpow.pop %v871
    %v873 = vadd.f32 %v872, 1.0
    %v874 = vrcp.pop %v873
    %v875 = vmul.f32 %v873, %v874
    %v876 = vsub.f32 1.0, %v875
    %v877 = vmul.f32 %v874, %v876
    %v878 = vadd.f32 %v874, %v877
    %vm879 = vweird.f32 %v873
    %vm880 = vweird.f32 %v874
    %vm881 = vmor %vm879, %vm880
    %v882 = vsel %vm881, %v874, %v878
    %v883 = vand.u32 2147483647, %v873
    %vm884 = vcmp.eq.f32.partialorder %v883, 8.507059e+37
    %v885 = vand.u32 %v873, 2147483648
    %v886 = vor.u32 1.1754944e-38, %v885
    %v887 = vsel %vm884, %v886, %v882
    %v888 = vmul.f32 1.0, %v887
    %889 = vst [vmem:[%s4] sm:$0x1] %v888
    // Predicated region
    $region30: #{transformer_reg_forward.1} parent=1 // pred_check
      _
    $region31: #{transformer_reg_forward.1} parent=1 // pred_check_branch
      %891 = sbr.rel (0) target = $region33
    $region32: #{transformer_reg_forward.1} parent=1 // pred_region
      _
    $region33: #{transformer_reg_forward.1} parent=1 // pred_fallthru
      _
    // Predicated region
    $region34: #{transformer_reg_forward.1} parent=1 // pred_check
      _
    $region35: #{transformer_reg_forward.1} parent=1 // pred_check_branch
      %893 = sbr.rel (0) target = $region37
    $region36: #{transformer_reg_forward.1} parent=1 // pred_region
      _
    $region37: #{transformer_reg_forward.1} parent=1 // pred_fallthru
      _
    %894 = vsyncpa [#allocation3], 1
    %895 = vsyncpa [#allocation5], 1

</llo_original>
